<compile_context>
chip_gen: v6e
topology: v6e:2x2x1
jax: 0.10.0
libtpu: 0.0.40
codegen_flags: <defaults>
</compile_context>

<pallas_src>
import jax
import jax.numpy as jnp
from jax import lax
from jax.experimental import pallas as pl
from jax.experimental.pallas import tpu as pltpu


# --------------------------------------------------------------------------
# Kernel 1: prologue -- embedding gather (data-dependent DMA) + fc1 + fc2.
# --------------------------------------------------------------------------
def prologue_kernel(ids_ref,               # (Bp,) int32   SMEM (scalar prefetch)
                    table_ref,             # (V, E) f32    HBM (pl.ANY)
                    w1_ref, b1_ref,        # (E, H) bf16 / (1, H) f32   VMEM
                    w2_ref, b2_ref,        # (H, H) bf16 / (1, H) f32   VMEM
                    h2_ref,                # (Bp, H) bf16  VMEM output
                    emb_ref, sems):        # scratch: (Bp, E) f32, DMA sems (Bp,)
    Bp = emb_ref.shape[0]
    V = table_ref.shape[0]

    # Data-dependent row gather: Bp row DMAs HBM -> VMEM.  fori_loop keeps the
    # descriptor-issue code compact if Bp grows to hundreds of rows.
    def issue(b, carry):
        raw = ids_ref[b]
        # TODO(synk): PyTorch nn.Embedding raises on out-of-range ids; here
        # they are remapped to the all-zero padding row 0 instead.
        idx = jnp.where((raw >= 0) & (raw < V), raw, 0)
        pltpu.make_async_copy(table_ref.at[idx], emb_ref.at[b], sems.at[b]).start()
        return carry

    def wait(b, carry):
        pltpu.make_async_copy(table_ref.at[0], emb_ref.at[b], sems.at[b]).wait()
        return carry

    lax.fori_loop(0, Bp, issue, 0)
    lax.fori_loop(0, Bp, wait, 0)

    emb = emb_ref[...].astype(jnp.bfloat16)
    # fc1 + ReLU (bf16 MXU inputs, f32 accumulation)
    h1 = jnp.maximum(
        jnp.dot(emb, w1_ref[...], preferred_element_type=jnp.float32) + b1_ref[...],
        0.0)
    # TODO(synk): nn.Dropout(0.2) is identity in eval mode; training-mode
    # stochastic masking (pltpu.prng_*) is not implemented here.
    # fc2 + ReLU
    h2 = jnp.maximum(
        jnp.dot(h1.astype(jnp.bfloat16), w2_ref[...],
                preferred_element_type=jnp.float32) + b2_ref[...],
        0.0)
    # (Bp, H) bf16 with Bp=8 is below the (16, 128) bf16 tile minimum; Mosaic
    # sub-tile-pads it (correct, just slightly wasteful).
    h2_ref[...] = h2.astype(h2_ref.dtype)


# --------------------------------------------------------------------------
# Kernel 2: fc3 streamed over lane-dense vocab tiles (int8 w3, f32 logits).
# --------------------------------------------------------------------------
def fc3_kernel(h2_ref, w3_ref, scale_ref, b3_ref, out_ref):
    # int8 weight tile -> bf16 on the VPU (exact: |w| <= 127), MXU matmul with
    # f32 accumulation, then per-column dequant scale + bias.
    w = w3_ref[...].astype(jnp.bfloat16)
    acc = jnp.dot(h2_ref[...], w, preferred_element_type=jnp.float32)
    # TODO(synk): logits could be emitted in bf16 to save writeback bandwidth;
    # kept f32 to match the PyTorch module's output dtype.
    out_ref[...] = acc * scale_ref[...] + b3_ref[...]


# --------------------------------------------------------------------------
# Tiling / VMEM-budget helpers (per-generation).
# --------------------------------------------------------------------------
_B_MAX_FOR_TILING = 256      # batch assumed when sizing the streaming tile


def _round_up(x: int, m: int) -> int:
    return -(-x // m) * m


def _vmem_capacity_bytes() -> int:
    try:
        cap = int(pltpu.get_tpu_info().vmem_capacity_bytes)
        if cap > 0:
            return cap
    except Exception:
        pass
    return 64 << 20          # conservative fallback (v7x per-core VMEM)


def _fc3_tile_footprint(B: int, H: int, TN: int) -> int:
    # One buffer's worth of fc3 streaming state, in bytes.
    return H * TN * 1 + 2 * TN * 4 + B * TN * 4   # int8 w3 + f32 scale/bias + f32 out


def _choose_vocab_tile(V: int, H: int):
    """Largest lane-dense vocab tile whose double-buffered footprint fits in
    ~half of this generation's VMEM.  Small vocabularies get a single tile."""
    budget = _vmem_capacity_bytes() // 2
    vp128 = _round_up(V, 128)
    if vp128 <= 8192 and 2 * _fc3_tile_footprint(_B_MAX_FOR_TILING, H, vp128) <= budget:
        return vp128, vp128                        # one tile, no pipeline overhead
    for tn in (8192, 4096, 2048, 1024, 512, 256, 128):
        if 2 * _fc3_tile_footprint(_B_MAX_FOR_TILING, H, tn) <= budget:
            return tn, _round_up(V, tn)
    return 128, _round_up(V, 128)


def _fc3_vmem_limit(B: int, H: int, TN: int) -> int:
    cap = (_vmem_capacity_bytes() * 3) // 4        # <=48 MiB v7x, <=96 MiB v5e/v6e
    need = B * H * 2 + 2 * _fc3_tile_footprint(B, H, TN)
    return int(min(cap, max(16 << 20, 2 * need)))


# --------------------------------------------------------------------------
# Parameter init (matches nn.Embedding / nn.Linear defaults, transposed).
# --------------------------------------------------------------------------
def init_params(key, num_items: int, embedding_dim: int = 64, hidden_dim: int = 128):
    V = num_items + 1
    E, H = embedding_dim, hidden_dim
    TN, Vp = _choose_vocab_tile(V, H)

    k_emb, k1, kb1, k2, kb2, k3, kb3 = jax.random.split(key, 7)

    # nn.Embedding: N(0, 1), padding row 0 zeroed.  Kept f32 (only B rows are
    # ever gathered, so table dtype is not a bandwidth concern).
    table = jax.random.normal(k_emb, (V, E), dtype=jnp.float32).at[0].set(0.0)

    def linear(kw, kb, fan_in, fan_out):
        bound = 1.0 / float(fan_in) ** 0.5
        w = jax.random.uniform(kw, (fan_in, fan_out), jnp.float32, -bound, bound)
        b = jax.random.uniform(kb, (1, fan_out), jnp.float32, -bound, bound)
        return w, b

    w1, b1 = linear(k1, kb1, E, H)
    w2, b2 = linear(k2, kb2, H, H)
    w3, b3 = linear(k3, kb3, H, V)

    # Pad the fc3 vocab axis to a multiple of the streaming tile.
    w3 = jnp.pad(w3, ((0, 0), (0, Vp - V)))
    b3 = jnp.pad(b3, ((0, 0), (0, Vp - V)))

    # w3 dominates HBM traffic -> symmetric per-column int8 quantization.
    absmax = jnp.max(jnp.abs(w3), axis=0, keepdims=True)
    w3_scale = jnp.where(absmax > 0.0, absmax / 127.0, 1.0)
    w3_i8 = jnp.clip(jnp.round(w3 / w3_scale), -127, 127).astype(jnp.int8)

    return dict(table=table,
                w1=w1.astype(jnp.bfloat16), b1=b1,
                w2=w2.astype(jnp.bfloat16), b2=b2,
                w3=w3_i8, w3_scale=w3_scale, b3=b3)


# --------------------------------------------------------------------------
# Forward pass.
# --------------------------------------------------------------------------
def deep_recommender_forward(item_ids, params):
    """item_ids: int array (B,). Returns (B, num_items + 1) f32 logits."""
    table = params["table"]
    V, E = table.shape
    H = params["w1"].shape[1]
    Vp = params["w3"].shape[1]
    TN, vp_expected = _choose_vocab_tile(V, H)
    assert Vp == vp_expected and Vp % TN == 0
    nt = Vp // TN

    B = item_ids.shape[0]
    Bp = max(8, _round_up(B, 8))
    ids = jnp.zeros((Bp,), jnp.int32).at[:B].set(item_ids.astype(jnp.int32))

    # ---- stage 1: embedding gather + fc1 + fc2 -> h2 (bf16) -------------
    h2 = pl.pallas_call(
        prologue_kernel,
        grid_spec=pltpu.PrefetchScalarGridSpec(
            num_scalar_prefetch=1,
            grid=(1,),
            in_specs=[
                pl.BlockSpec(memory_space=pl.ANY),              # table stays in HBM
                pl.BlockSpec((E, H), lambda i, ids: (0, 0)),    # w1
                pl.BlockSpec((1, H), lambda i, ids: (0, 0)),    # b1
                pl.BlockSpec((H, H), lambda i, ids: (0, 0)),    # w2
                pl.BlockSpec((1, H), lambda i, ids: (0, 0)),    # b2
            ],
            out_specs=pl.BlockSpec((Bp, H), lambda i, ids: (0, 0)),
            scratch_shapes=[
                pltpu.VMEM((Bp, E), jnp.float32),               # gathered rows
                pltpu.SemaphoreType.DMA((Bp,)),
            ],
        ),
        out_shape=jax.ShapeDtypeStruct((Bp, H), jnp.bfloat16),
        compiler_params=pltpu.CompilerParams(
            dimension_semantics=("arbitrary",),
            vmem_limit_bytes=32 << 20,
        ),
    )(ids, table, params["w1"], params["b1"], params["w2"], params["b2"])

    # ---- stage 2: stream fc3 over lane-dense vocab tiles ----------------
    flops = 2 * Bp * H * Vp
    bytes_accessed = (H * Vp            # int8 w3
                      + 8 * Vp          # f32 scale + bias
                      + 2 * Bp * H      # bf16 h2
                      + 4 * Bp * Vp)    # f32 logits

    out = pl.pallas_call(
        fc3_kernel,
        grid_spec=pltpu.PrefetchScalarGridSpec(
            num_scalar_prefetch=0,
            grid=(nt,),
            in_specs=[
                pl.BlockSpec((Bp, H), lambda n: (0, 0)),   # h2 (constant block)
                pl.BlockSpec((H, TN), lambda n: (0, n)),   # int8 w3 tile
                pl.BlockSpec((1, TN), lambda n: (0, n)),   # per-column scale
                pl.BlockSpec((1, TN), lambda n: (0, n)),   # bias
            ],
            out_specs=pl.BlockSpec((Bp, TN), lambda n: (0, n)),
        ),
        out_shape=jax.ShapeDtypeStruct((Bp, Vp), jnp.float32),
        compiler_params=pltpu.CompilerParams(
            # No cross-step scratch dependency -> vocab axis may be sharded
            # across both v7x TensorCores; neutral on single-TC v5e/v6e.
            dimension_semantics=("parallel",),
            vmem_limit_bytes=_fc3_vmem_limit(Bp, H, TN),
        ),
        cost_estimate=pl.CostEstimate(flops=flops, transcendentals=0,
                                      bytes_accessed=bytes_accessed),
    )(h2, params["w3"], params["w3_scale"], params["b3"])

    return out[:B, :V]


# --------------------------------------------------------------------------
# Pure-JAX reference with identical numerics (bf16 weights, int8 w3 dequant).
# --------------------------------------------------------------------------
def reference_forward(item_ids, params):
    table = params["table"]
    V = table.shape[0]
    ids = jnp.where((item_ids >= 0) & (item_ids < V), item_ids, 0)
    emb = table[ids].astype(jnp.bfloat16)
    h1 = jnp.maximum(
        jnp.dot(emb, params["w1"], preferred_element_type=jnp.float32)
        + params["b1"], 0.0)
    h2 = jnp.maximum(
        jnp.dot(h1.astype(jnp.bfloat16), params["w2"],
                preferred_element_type=jnp.float32) + params["b2"], 0.0)
    w3 = params["w3"].astype(jnp.bfloat16)
    out = (jnp.dot(h2.astype(jnp.bfloat16), w3, preferred_element_type=jnp.float32)
           * params["w3_scale"] + params["b3"])
    return out[:, :V]


if __name__ == "__main__":
    num_items = 99            # vocabulary = num_items + 1 = 100 ids (incl. padding id 0)
    embedding_dim = 64
    hidden_dim = 128
    batch = 8

    key = jax.random.PRNGKey(0)
    k_params, k_ids = jax.random.split(key)
    params = init_params(k_params, num_items, embedding_dim, hidden_dim)

    # Input: (batch,) item ids in [0, num_items]
    item_ids = jax.random.randint(k_ids, (batch,), 0, num_items + 1, dtype=jnp.int32)

    logits = deep_recommender_forward(item_ids, params)
    logits = jax.block_until_ready(logits)

    ref = reference_forward(item_ids, params)
    assert logits.shape == (batch, num_items + 1)
    assert jnp.allclose(logits, ref, atol=2e-2, rtol=2e-2), \
        float(jnp.max(jnp.abs(logits - ref)))

    print("KERNEL_OK")
</pallas_src>

<mosaic_0001>
module attributes {stable_mosaic.version = 11 : i64} {
  func.func @prologue_kernel(%arg0: i32, %arg1: memref<8xi32, #tpu.memory_space<smem>>, %arg2: memref<100x64xf32, #tpu.memory_space<any>>, %arg3: memref<64x128xbf16, #tpu.memory_space<vmem>>, %arg4: memref<1x128xf32, #tpu.memory_space<vmem>>, %arg5: memref<128x128xbf16, #tpu.memory_space<vmem>>, %arg6: memref<1x128xf32, #tpu.memory_space<vmem>>, %arg7: memref<8x128xbf16, #tpu.memory_space<vmem>>, %arg8: memref<8x64xf32, #tpu.memory_space<vmem>>, %arg9: memref<8x!tpu.dma_semaphore, #tpu.memory_space<semaphore_mem>>) attributes {dimension_semantics = [#tpu.dimension_semantics<arbitrary>], iteration_bounds = array<i64: 1>, scalar_prefetch = 1 : i64, scratch_operands = 2 : i64, tpu.core_type = #tpu.core_type<tc>, window_params = [{}, {pipeline_mode = #tpu.pipeline_mode<synchronous>, transform_indices = @transform_1, window_bounds = array<i64: 64, 128>}, {pipeline_mode = #tpu.pipeline_mode<synchronous>, transform_indices = @transform_2, window_bounds = array<i64: 1, 128>}, {pipeline_mode = #tpu.pipeline_mode<synchronous>, transform_indices = @transform_3, window_bounds = array<i64: 128, 128>}, {pipeline_mode = #tpu.pipeline_mode<synchronous>, transform_indices = @transform_4, window_bounds = array<i64: 1, 128>}, {pipeline_mode = #tpu.pipeline_mode<synchronous>, transform_indices = @transform_5, window_bounds = array<i64: 8, 128>}]} {
    %c0_i32 = arith.constant 0 : i32
    %c8_i32 = arith.constant 8 : i32
    %0 = arith.addi %c0_i32, %c8_i32 : i32
    %c1_i32 = arith.constant 1 : i32
    scf.for %arg10 = %c0_i32 to %0 step %c1_i32  : i32 {
      %21 = arith.index_cast %arg10 : i32 to index
      %22 = memref.load %arg1[%21] : memref<8xi32, #tpu.memory_space<smem>>
      %c0_i32_19 = arith.constant 0 : i32
      %23 = arith.cmpi sge, %22, %c0_i32_19 : i32
      %c100_i32 = arith.constant 100 : i32
      %24 = arith.cmpi slt, %22, %c100_i32 : i32
      %25 = arith.andi %23, %24 : i1
      %c0_i32_20 = arith.constant 0 : i32
      %26 = arith.select %25, %22, %c0_i32_20 : i32
      %c0_i32_21 = arith.constant 0 : i32
      %27 = tpu.memref_slice %arg2[%26, %c0_i32_21] : memref<100x64xf32, #tpu.memory_space<any>> -> memref<1x64xf32, #tpu.memory_space<any>>
      %28 = tpu.memref_squeeze %27 : memref<1x64xf32, #tpu.memory_space<any>> -> memref<64xf32, #tpu.memory_space<any>>
      %c0_i32_22 = arith.constant 0 : i32
      %29 = tpu.memref_slice %arg8[%arg10, %c0_i32_22] : memref<8x64xf32, #tpu.memory_space<vmem>> -> memref<1x64xf32, #tpu.memory_space<vmem>>
      %30 = tpu.memref_squeeze %29 : memref<1x64xf32, #tpu.memory_space<vmem>> -> memref<64xf32, #tpu.memory_space<vmem>>
      %31 = tpu.memref_slice %arg9[%arg10] : memref<8x!tpu.dma_semaphore, #tpu.memory_space<semaphore_mem>> -> memref<1x!tpu.dma_semaphore, #tpu.memory_space<semaphore_mem>>
      %32 = tpu.memref_squeeze %31 : memref<1x!tpu.dma_semaphore, #tpu.memory_space<semaphore_mem>> -> memref<!tpu.dma_semaphore, #tpu.memory_space<semaphore_mem>>
      tpu.enqueue_dma source(%28 : memref<64xf32, #tpu.memory_space<any>>) target(%30 : memref<64xf32, #tpu.memory_space<vmem>>) target_semaphore(%32 : memref<!tpu.dma_semaphore, #tpu.memory_space<semaphore_mem>>)
    }
    %c8_i32_0 = arith.constant 8 : i32
    %c0_i32_1 = arith.constant 0 : i32
    %c8_i32_2 = arith.constant 8 : i32
    %1 = arith.addi %c0_i32_1, %c8_i32_2 : i32
    %c1_i32_3 = arith.constant 1 : i32
    scf.for %arg10 = %c0_i32_1 to %1 step %c1_i32_3  : i32 {
      %c0_i32_19 = arith.constant 0 : i32
      %c0_i32_20 = arith.constant 0 : i32
      %21 = tpu.memref_slice %arg2[%c0_i32_19, %c0_i32_20] : memref<100x64xf32, #tpu.memory_space<any>> -> memref<1x64xf32, #tpu.memory_space<any>>
      %22 = tpu.memref_squeeze %21 : memref<1x64xf32, #tpu.memory_space<any>> -> memref<64xf32, #tpu.memory_space<any>>
      %c0_i32_21 = arith.constant 0 : i32
      %23 = tpu.memref_slice %arg8[%arg10, %c0_i32_21] : memref<8x64xf32, #tpu.memory_space<vmem>> -> memref<1x64xf32, #tpu.memory_space<vmem>>
      %24 = tpu.memref_squeeze %23 : memref<1x64xf32, #tpu.memory_space<vmem>> -> memref<64xf32, #tpu.memory_space<vmem>>
      %25 = tpu.memref_slice %arg9[%arg10] : memref<8x!tpu.dma_semaphore, #tpu.memory_space<semaphore_mem>> -> memref<1x!tpu.dma_semaphore, #tpu.memory_space<semaphore_mem>>
      %26 = tpu.memref_squeeze %25 : memref<1x!tpu.dma_semaphore, #tpu.memory_space<semaphore_mem>> -> memref<!tpu.dma_semaphore, #tpu.memory_space<semaphore_mem>>
      tpu.wait_dma2 semaphore(%26 : memref<!tpu.dma_semaphore, #tpu.memory_space<semaphore_mem>>) src(%22 : memref<64xf32, #tpu.memory_space<any>>) dst(%24 : memref<64xf32, #tpu.memory_space<vmem>>)
    }
    %c8_i32_4 = arith.constant 8 : i32
    %c0 = arith.constant 0 : index
    %c0_5 = arith.constant 0 : index
    %2 = vector.load %arg8[%c0, %c0_5] : memref<8x64xf32, #tpu.memory_space<vmem>>, vector<8x64xf32>
    %3 = arith.truncf %2 : vector<8x64xf32> to vector<8x64xbf16>
    %c0_6 = arith.constant 0 : index
    %c0_7 = arith.constant 0 : index
    %4 = vector.load %arg3[%c0_6, %c0_7] : memref<64x128xbf16, #tpu.memory_space<vmem>>, vector<64x128xbf16>
    %cst = arith.constant dense<0.000000e+00> : vector<8x128xf32>
    %5 = tpu.matmul %3, %4, %cst {dimension_numbers = #tpu.dot_dimension_numbers<[1], [0], [0], [1], [0, 0, 1, 1], [], []>} : vector<8x64xbf16>, vector<64x128xbf16>, vector<8x128xf32> -> vector<8x128xf32>
    %c0_8 = arith.constant 0 : index
    %c0_9 = arith.constant 0 : index
    %6 = vector.load %arg4[%c0_8, %c0_9] : memref<1x128xf32, #tpu.memory_space<vmem>>, vector<1x128xf32>
    %7 = vector.broadcast %6 : vector<1x128xf32> to vector<8x128xf32>
    %8 = arith.addf %5, %7 : vector<8x128xf32>
    %cst_10 = arith.constant 0.000000e+00 : f32
    %9 = vector.broadcast %cst_10 : f32 to vector<8x128xf32>
    %10 = arith.maximumf %8, %9 : vector<8x128xf32>
    %11 = arith.truncf %10 : vector<8x128xf32> to vector<8x128xbf16>
    %c0_11 = arith.constant 0 : index
    %c0_12 = arith.constant 0 : index
    %12 = vector.load %arg5[%c0_11, %c0_12] : memref<128x128xbf16, #tpu.memory_space<vmem>>, vector<128x128xbf16>
    %cst_13 = arith.constant dense<0.000000e+00> : vector<8x128xf32>
    %13 = tpu.matmul %11, %12, %cst_13 {dimension_numbers = #tpu.dot_dimension_numbers<[1], [0], [0], [1], [0, 0, 1, 1], [], []>} : vector<8x128xbf16>, vector<128x128xbf16>, vector<8x128xf32> -> vector<8x128xf32>
    %c0_14 = arith.constant 0 : index
    %c0_15 = arith.constant 0 : index
    %14 = vector.load %arg6[%c0_14, %c0_15] : memref<1x128xf32, #tpu.memory_space<vmem>>, vector<1x128xf32>
    %15 = vector.broadcast %14 : vector<1x128xf32> to vector<8x128xf32>
    %16 = arith.addf %13, %15 : vector<8x128xf32>
    %cst_16 = arith.constant 0.000000e+00 : f32
    %17 = vector.broadcast %cst_16 : f32 to vector<8x128xf32>
    %18 = arith.maximumf %16, %17 : vector<8x128xf32>
    %19 = arith.truncf %18 : vector<8x128xf32> to vector<8x128xbf16>
    %c0_17 = arith.constant 0 : index
    %c0_18 = arith.constant 0 : index
    %20 = vector.load %arg7[%c0_17, %c0_18] : memref<8x128xbf16, #tpu.memory_space<vmem>>, vector<8x128xbf16>
    tpu.vector_store %arg7[%c0_17, %c0_18], %19 {strides = array<i32>} : memref<8x128xbf16, #tpu.memory_space<vmem>>, vector<8x128xbf16>,
    return
  }
  func.func @transform_1(%arg0: i32, %arg1: memref<8xi32, #tpu.memory_space<smem>>) -> (i32, i32) {
    %c0_i32 = arith.constant 0 : i32
    %c0_i32_0 = arith.constant 0 : i32
    %c0_i32_1 = arith.constant 0 : i32
    return %c0_i32, %c0_i32_0 : i32, i32
  }
  func.func @transform_2(%arg0: i32, %arg1: memref<8xi32, #tpu.memory_space<smem>>) -> (i32, i32) {
    %c0_i32 = arith.constant 0 : i32
    %c0_i32_0 = arith.constant 0 : i32
    %c0_i32_1 = arith.constant 0 : i32
    return %c0_i32, %c0_i32_0 : i32, i32
  }
  func.func @transform_3(%arg0: i32, %arg1: memref<8xi32, #tpu.memory_space<smem>>) -> (i32, i32) {
    %c0_i32 = arith.constant 0 : i32
    %c0_i32_0 = arith.constant 0 : i32
    %c0_i32_1 = arith.constant 0 : i32
    return %c0_i32, %c0_i32_0 : i32, i32
  }
  func.func @transform_4(%arg0: i32, %arg1: memref<8xi32, #tpu.memory_space<smem>>) -> (i32, i32) {
    %c0_i32 = arith.constant 0 : i32
    %c0_i32_0 = arith.constant 0 : i32
    %c0_i32_1 = arith.constant 0 : i32
    return %c0_i32, %c0_i32_0 : i32, i32
  }
  func.func @transform_5(%arg0: i32, %arg1: memref<8xi32, #tpu.memory_space<smem>>) -> (i32, i32) {
    %c0_i32 = arith.constant 0 : i32
    %c0_i32_0 = arith.constant 0 : i32
    %c0_i32_1 = arith.constant 0 : i32
    return %c0_i32, %c0_i32_0 : i32, i32
  }
}

</mosaic_0001>

<llo_original>
// kernel: tpu_custom_call.1
$region0: #{tpu_custom_call.1}
  #allocation0 [shape = 'u32[]', space=smem, size = 0x4, offset = 0x4, fixed_abs, tag = 'smem constant byte address 0x4 - core index']
  #allocation1 [shape = 'u32[144,128]{1,0:T(1,128)}', space=vmem, size = 0x12000, scoped, tag = 'internal scratch']
  #allocation2 [shape = 'f32[8,64]{1,0:T(8,128)}', space=vmem, size = 0x1000, scoped, tag = 'scratch operand']
  #allocation3 [shape = 's32[8]{0}', space=sflag, size = 0x20, scoped, tag = 'scratch operand']
  #allocation4 [shape = 's32[1]{0}', space=sflag, size = 0x4, scoped, tag = 'scoped memory for tpu_custom_call.1']
  #allocation5 [shape = 'u8[512]{0}', space=smem, size = 0x200, scoped, tag = 'prefetched SMEM operand 0']
  #allocation8 [shape = 's32[]', space=sflag, size = 0x4, offset = 0, fixed_abs, tag = 'sflag constant byte address 0x0 - dummy sync flag']
  %s0 = inlined_call_operand.vmem [shape: s32[8], index: 0, kind: input, shape index: {}]
  %s1 = inlined_call_operand.vmem [shape: f32[100,64], index: 1, kind: input, shape index: {}]
  %s2 = inlined_call_operand.vmem [shape: bf16[64,128], index: 2, kind: input, shape index: {}]
  %s3 = inlined_call_operand.vmem [shape: f32[1,128], index: 3, kind: input, shape index: {}]
  %s4 = inlined_call_operand.vmem [shape: bf16[128,128], index: 4, kind: input, shape index: {}]
  %s5 = inlined_call_operand.vmem [shape: f32[1,128], index: 5, kind: input, shape index: {}]
  %s6 = inlined_call_operand.hbm [shape: bf16[8,128], index: 6, kind: output, shape index: {}]
  %s7 = sld [smem:[#allocation0]]
  $region70: #{tpu_custom_call.1} parent=0
    _
  %s9 = ssub.s32 1, %s7
  %s10 = scalar_select 0, %s9, %s7
  %s11 = sshll.u32 %s0, 4
  %s12 = int_to_ptr.vmem [resolvable:$true] %s11
  %14 = dma.vmem_to_smem %s12, 16, [#allocation5], [#allocation4]
  %15 = dma.done [#allocation4], 16
  %16 = sfence
  $region1: #{tpu_custom_call.1} parent=0
    #allocation6 [shape = 'u8[2048]{0}', space=vmem, size = 0x800, scoped, tag = 'output window, operand 0, single buffered']
    #allocation7 [shape = 's32[1]{0}', space=sflag, size = 0x4, scoped, tag = 'scoped memory for tpu_custom_call.1']
    %17 = vsyncpa [#allocation7], 0
    // Predicated region
    $region2: #{tpu_custom_call.1} parent=1 // pred_check
      _
    $region3: #{tpu_custom_call.1} parent=1 // pred_check_branch
      %19 = sbr.rel (0) target = $region5
    $region4: #{tpu_custom_call.1} parent=1 // pred_region
      _
    $region5: #{tpu_custom_call.1} parent=1 // pred_fallthru
      _
    // Predicated region
    $region6: #{tpu_custom_call.1} parent=1 // pred_check
      _
    $region7: #{tpu_custom_call.1} parent=1 // pred_check_branch
      %21 = sbr.rel (0) target = $region9
    $region8: #{tpu_custom_call.1} parent=1 // pred_region
      _
    $region9: #{tpu_custom_call.1} parent=1 // pred_fallthru
      _
    // Predicated region
    $region10: #{tpu_custom_call.1} parent=1 // pred_check
      _
    $region11: #{tpu_custom_call.1} parent=1 // pred_check_branch
      %23 = sbr.rel (0) target = $region13
    $region12: #{tpu_custom_call.1} parent=1 // pred_region
      _
    $region13: #{tpu_custom_call.1} parent=1 // pred_fallthru
      _
    // Predicated region
    $region14: #{tpu_custom_call.1} parent=1 // pred_check
      _
    $region15: #{tpu_custom_call.1} parent=1 // pred_check_branch
      %25 = sbr.rel (0) target = $region17
    $region16: #{tpu_custom_call.1} parent=1 // pred_region
      _
    $region17: #{tpu_custom_call.1} parent=1 // pred_fallthru
      _
    loop: start=0, step=1, limit=8
    $region18: #{tpu_custom_call.1} parent=1 // loop_pre_header
      _
    $region19: #{tpu_custom_call.1} parent=1 // loop_header
      %s28 = sphi 0, %s32
      %p29 = scmp.ge.s32.totalorder %s28, 8
    $region20: #{tpu_custom_call.1} parent=1 // loop_header_branch
      %31 = sbr.rel (%p29) target = $region24
    $region21: #{tpu_custom_call.1} parent=1 // loop_body
      %s33 = sld [smem:[#allocation5 + %s28]]
      %p34 = scmp.ge.s32.totalorder %s33, 0
      %p35 = scmp.lt.s32.totalorder %s33, 100
      %p36 = pnand %p34, %p35
      %p37 = pneg %p36
      %s38 = scalar_select %p37, %s33, 0
      %s39 = scalar_lea.vmem %s1, %s38
      %s40 = scalar_lea.vmem [#allocation2], %s28
      %s41 = scalar_lea.sflag [#allocation3], %s28
      %p43 = scmp.lt.u32.totalorder 1, 8
      %p44 = pneg %p43
      // Predicated region
      $region25: #{tpu_custom_call.1} parent=21 // pred_check
        _
      $region26: #{tpu_custom_call.1} parent=21 // pred_check_branch
        %46 = sbr.rel (%p43) target = $region28
      $region27: #{tpu_custom_call.1} parent=21 // pred_region
        %s62 = sand.u32 1, 7
        %p63 = scmp.eq.s32.totalorder %s62, 0
        %p64 = pneg %p63
        // Predicated region
        $region40: #{tpu_custom_call.1} parent=27 // pred_check
          _
        $region41: #{tpu_custom_call.1} parent=27 // pred_check_branch
          %66 = sbr.rel (%p63) target = $region43
        $region42: #{tpu_custom_call.1} parent=27 // pred_region
          %s67 = sand.u32 1, 7
          %s68 = ssub.s32 1, %s67
          %s69 = scalar_lea.vmem %s39, %s68
          %s70 = ssub.s32 1, %s67
          %s71 = scalar_lea.vmem %s40, %s70 [#allocation2]
          %s72 = sshll.u32 1, %s67
          %s73 = ssub.s32 %s72, 1
          loop: start=0, step=1, limit=1
          $region44: #{tpu_custom_call.1} parent=42 // loop_pre_header
            _
          $region45: #{tpu_custom_call.1} parent=42 // loop_header
            %s75 = sphi 0, %s79
            %p76 = scmp.ge.s32.totalorder %s75, 1
            %s80 = sphi %s69, %s69
            %s81 = sphi %s71, %s71
          $region46: #{tpu_custom_call.1} parent=42 // loop_header_branch
            %78 = sbr.rel (%p76) target = $region50
          $region47: #{tpu_custom_call.1} parent=42 // loop_body
            %v82 = vld [vmem:[%s80] sm:%s73]
            %83 = vst [vmem:[%s81] sm:%s73] %v82
          $region48: #{tpu_custom_call.1} parent=42 // loop_footer
            %s79 = sadd.s32 1, %s75
          $region49: #{tpu_custom_call.1} parent=42 // loop_footer_branch
            %74 = sbr.rel target = $region45
          $region50: #{tpu_custom_call.1} parent=42 // loop_exit
            _
        $region43: #{tpu_custom_call.1} parent=27 // pred_fallthru
          _
      $region28: #{tpu_custom_call.1} parent=21 // pred_fallthru
        _
      // Predicated region
      $region29: #{tpu_custom_call.1} parent=21 // pred_check
        %p47 = pneg %p43
      $region30: #{tpu_custom_call.1} parent=21 // pred_check_branch
        %49 = sbr.rel (%p47) target = $region32
      $region31: #{tpu_custom_call.1} parent=21 // pred_region
        %s50 = sshll.u32 1, 1
        %s51 = ssub.s32 %s50, 1
        loop: start=0, step=1, limit=1
        $region33: #{tpu_custom_call.1} parent=31 // loop_pre_header
          _
        $region34: #{tpu_custom_call.1} parent=31 // loop_header
          %s53 = sphi 0, %s57
          %p54 = scmp.ge.s32.totalorder %s53, 1
          %s58 = sphi %s39, %s39
          %s59 = sphi %s40, %s40
        $region35: #{tpu_custom_call.1} parent=31 // loop_header_branch
          %56 = sbr.rel (%p54) target = $region39
        $region36: #{tpu_custom_call.1} parent=31 // loop_body
          %v60 = vld [vmem:[%s58] sm:%s51]
          %61 = vst [vmem:[%s59] sm:%s51] %v60
        $region37: #{tpu_custom_call.1} parent=31 // loop_footer
          %s57 = sadd.s32 1, %s53
        $region38: #{tpu_custom_call.1} parent=31 // loop_footer_branch
          %52 = sbr.rel target = $region34
        $region39: #{tpu_custom_call.1} parent=31 // loop_exit
          _
      $region32: #{tpu_custom_call.1} parent=21 // pred_fallthru
        _
      // Predicated region
      $region51: #{tpu_custom_call.1} parent=21 // pred_check
        _
      $region52: #{tpu_custom_call.1} parent=21 // pred_check_branch
        %86 = sbr.rel (0) target = $region54
      $region53: #{tpu_custom_call.1} parent=21 // pred_region
        %87 = vsyncadd %s41, 16
      $region54: #{tpu_custom_call.1} parent=21 // pred_fallthru
        _
    $region22: #{tpu_custom_call.1} parent=1 // loop_footer
      %s32 = sadd.s32 1, %s28
    $region23: #{tpu_custom_call.1} parent=1 // loop_footer_branch
      %27 = sbr.rel target = $region19
    $region24: #{tpu_custom_call.1} parent=1 // loop_exit
      _
    loop: start=0, step=1, limit=8
    $region55: #{tpu_custom_call.1} parent=1 // loop_pre_header
      _
    $region56: #{tpu_custom_call.1} parent=1 // loop_header
      %s89 = sphi 0, %s93
      %p90 = scmp.ge.s32.totalorder %s89, 8
    $region57: #{tpu_custom_call.1} parent=1 // loop_header_branch
      %92 = sbr.rel (%p90) target = $region61
    $region58: #{tpu_custom_call.1} parent=1 // loop_body
      %s94 = scalar_lea.sflag [#allocation3], %s89
      %96 = dma.done %s94, 16
    $region59: #{tpu_custom_call.1} parent=1 // loop_footer
      %s93 = sadd.s32 1, %s89
    $region60: #{tpu_custom_call.1} parent=1 // loop_footer_branch
      %88 = sbr.rel target = $region56
    $region61: #{tpu_custom_call.1} parent=1 // loop_exit
      _
    %v97 = vld [vmem:[#allocation2] sm:$0xff]
    %v98 = vpack.c.bf16 %v97, %v97
    %v99 = vld [vmem:[%s2] sm:$0xf]
    %v100 = vld [vmem:[%s2 + $0x4] sm:$0xf]
    %v101 = vld [vmem:[%s2 + $0x8] sm:$0xf]
    %v102 = vld [vmem:[%s2 + $0xc] sm:$0xf]
    %v103 = vld [vmem:[%s2 + $0x10] sm:$0xf]
    %v104 = vld [vmem:[%s2 + $0x14] sm:$0xf]
    %v105 = vld [vmem:[%s2 + $0x18] sm:$0xf]
    %v106 = vld [vmem:[%s2 + $0x1c] sm:$0xf]
    %v107 = vld [vmem:[%s3] sm:$0x1]
    %v109 = vlaneseq
    %v110 = vshrl.u32 %v109, 7
    %v111 = vsub.s32 0, %v110
    %v112 = vrot.slane %v107, %v111
    %v122 = vunpack.c.l.b16 %v99
    %v123 = vunpack.c.l.b16 %v100
    %v124 = vunpack.c.l.b16 %v101
    %v125 = vunpack.c.l.b16 %v102
    %v126 = vunpack.c.l.b16 %v103
    %v127 = vunpack.c.l.b16 %v104
    %v128 = vunpack.c.l.b16 %v105
    %v129 = vunpack.c.l.b16 %v106
    %v130 = vpack.c.b16 %v123, %v122
    %v131 = vpack.c.b16 %v125, %v124
    %v132 = vpack.c.b16 %v127, %v126
    %v133 = vpack.c.b16 %v129, %v128
    %vm138 = vcmask 523264
    %v140 = vsel %vm138, %v98, 0
    %142 = vmatprep.subr.bf16.mxu0 0
    %143 = vmatpush1.bf16.msra.mxu0 0
    %144 = vmatprep.subr.bf16.mxu0 0
    %145 = vmatpush1.bf16.msra.mxu0 0
    %146 = vmatprep.subr.bf16.mxu0 0
    %147 = vmatpush1.bf16.msra.mxu0 0
    %148 = vmatprep.subr.bf16.mxu0 0
    %149 = vmatpush1.bf16.msra.mxu0 0
    %150 = vmatprep.subr.bf16.mxu0 0
    %151 = vmatpush1.bf16.msra.mxu0 %v133
    %152 = vmatprep.subr.bf16.mxu0 0
    %153 = vmatpush1.bf16.msra.mxu0 %v132
    %154 = vmatprep.subr.bf16.mxu0 0
    %155 = vmatpush1.bf16.msra.mxu0 %v131
    %156 = vmatprep.subr.bf16.mxu0 0
    %157 = vmatpush1.bf16.msra.mxu0 %v130
    %158 = vmatprep.subr.bf16.mxu0 0
    %159 = vmatpush2.bf16.msra.mxu0 0
    %160 = vmatprep.subr.bf16.mxu0 0
    %161 = vmatpush2.bf16.msra.mxu0 0
    %162 = vmatprep.subr.bf16.mxu0 0
    %163 = vmatpush2.bf16.msra.mxu0 0
    %164 = vmatprep.subr.bf16.mxu0 0
    %165 = vmatpush2.bf16.msra.mxu0 0
    %166 = vmatprep.subr.bf16.mxu0 0
    %167 = vmatpush2.bf16.msra.mxu0 0
    %168 = vmatprep.subr.bf16.mxu0 0
    %169 = vmatpush2.bf16.msra.mxu0 0
    %170 = vmatprep.subr.bf16.mxu0 0
    %171 = vmatpush2.bf16.msra.mxu0 0
    %172 = vmatprep.subr.bf16.mxu0 0
    %173 = vmatpush2.bf16.msra.mxu0 0
    %174 = vmatprep.mubr.bf16.mxu0 0
    %175 = vmatmul.mubr.bf16.gmra.mxu0 %v140
    %v176 = vpop.f32.mrf.mxu0
    %v177 = vadd.f32 %v112, %v176
    %v178 = vpop.f32.mrf.mxu0
    %v179 = vpop.f32.mrf.mxu0
    %v180 = vpop.f32.mrf.mxu0
    %181 = vdwg.mxu0
    %v182 = vmax.f32 %v177, 0.0
    %v183 = vpack.c.bf16 %v182, %v182
    %v184 = vld [vmem:[%s4] sm:$0xf]
    %v185 = vld [vmem:[%s4 + $0x4] sm:$0xf]
    %v186 = vld [vmem:[%s4 + $0x8] sm:$0xf]
    %v187 = vld [vmem:[%s4 + $0xc] sm:$0xf]
    %v188 = vld [vmem:[%s4 + $0x10] sm:$0xf]
    %v189 = vld [vmem:[%s4 + $0x14] sm:$0xf]
    %v190 = vld [vmem:[%s4 + $0x18] sm:$0xf]
    %v191 = vld [vmem:[%s4 + $0x1c] sm:$0xf]
    %v192 = vld [vmem:[%s4 + $0x20] sm:$0xf]
    %v193 = vld [vmem:[%s4 + $0x24] sm:$0xf]
    %v194 = vld [vmem:[%s4 + $0x28] sm:$0xf]
    %v195 = vld [vmem:[%s4 + $0x2c] sm:$0xf]
    %v196 = vld [vmem:[%s4 + $0x30] sm:$0xf]
    %v197 = vld [vmem:[%s4 + $0x34] sm:$0xf]
    %v198 = vld [vmem:[%s4 + $0x38] sm:$0xf]
    %v199 = vld [vmem:[%s4 + $0x3c] sm:$0xf]
    %v200 = vld [vmem:[%s5] sm:$0x1]
    %v202 = vlaneseq
    %v203 = vshrl.u32 %v202, 7
    %v204 = vsub.s32 0, %v203
    %v205 = vrot.slane %v200, %v204
    %v223 = vunpack.c.l.b16 %v184
    %v224 = vunpack.c.l.b16 %v185
    %v225 = vunpack.c.l.b16 %v186
    %v226 = vunpack.c.l.b16 %v187
    %v227 = vunpack.c.l.b16 %v188
    %v228 = vunpack.c.l.b16 %v189
    %v229 = vunpack.c.l.b16 %v190
    %v230 = vunpack.c.l.b16 %v191
    %v231 = vunpack.c.l.b16 %v192
    %v232 = vunpack.c.l.b16 %v193
    %v233 = vunpack.c.l.b16 %v194
    %v234 = vunpack.c.l.b16 %v195
    %v235 = vunpack.c.l.b16 %v196
    %v236 = vunpack.c.l.b16 %v197
    %v237 = vunpack.c.l.b16 %v198
    %v238 = vunpack.c.l.b16 %v199
    %v239 = vpack.c.b16 %v224, %v223
    %v240 = vpack.c.b16 %v226, %v225
    %v241 = vpack.c.b16 %v228, %v227
    %v242 = vpack.c.b16 %v230, %v229
    %v243 = vpack.c.b16 %v232, %v231
    %v244 = vpack.c.b16 %v234, %v233
    %v245 = vpack.c.b16 %v236, %v235
    %v246 = vpack.c.b16 %v238, %v237
    %255 = vmatprep.subr.bf16.mxu0 0
    %256 = vmatpush1.bf16.msra.mxu0 %v246
    %257 = vmatprep.subr.bf16.mxu0 0
    %258 = vmatpush1.bf16.msra.mxu0 %v245
    %259 = vmatprep.subr.bf16.mxu0 0
    %260 = vmatpush1.bf16.msra.mxu0 %v244
    %261 = vmatprep.subr.bf16.mxu0 0
    %262 = vmatpush1.bf16.msra.mxu0 %v243
    %263 = vmatprep.subr.bf16.mxu0 0
    %264 = vmatpush1.bf16.msra.mxu0 %v242
    %265 = vmatprep.subr.bf16.mxu0 0
    %266 = vmatpush1.bf16.msra.mxu0 %v241
    %267 = vmatprep.subr.bf16.mxu0 0
    %268 = vmatpush1.bf16.msra.mxu0 %v240
    %269 = vmatprep.subr.bf16.mxu0 0
    %270 = vmatpush1.bf16.msra.mxu0 %v239
    %271 = vmatprep.subr.bf16.mxu0 0
    %272 = vmatpush2.bf16.msra.mxu0 0
    %273 = vmatprep.subr.bf16.mxu0 0
    %274 = vmatpush2.bf16.msra.mxu0 0
    %275 = vmatprep.subr.bf16.mxu0 0
    %276 = vmatpush2.bf16.msra.mxu0 0
    %277 = vmatprep.subr.bf16.mxu0 0
    %278 = vmatpush2.bf16.msra.mxu0 0
    %279 = vmatprep.subr.bf16.mxu0 0
    %280 = vmatpush2.bf16.msra.mxu0 0
    %281 = vmatprep.subr.bf16.mxu0 0
    %282 = vmatpush2.bf16.msra.mxu0 0
    %283 = vmatprep.subr.bf16.mxu0 0
    %284 = vmatpush2.bf16.msra.mxu0 0
    %285 = vmatprep.subr.bf16.mxu0 0
    %286 = vmatpush2.bf16.msra.mxu0 0
    %287 = vmatprep.mubr.bf16.mxu0 0
    %288 = vmatmul.mubr.bf16.gmra.mxu0 %v183
    %v289 = vpop.f32.mrf.mxu0
    %v290 = vadd.f32 %v205, %v289
    %v291 = vpop.f32.mrf.mxu0
    %v292 = vpop.f32.mrf.mxu0
    %v293 = vpop.f32.mrf.mxu0
    %294 = vdwg.mxu0
    %v295 = vmax.f32 %v290, 0.0
    %v296 = vpack.c.bf16 %v295, %v295
    %297 = vst [vmem:[#allocation6] sm:$0xf] %v296
    // Predicated region
    $region62: #{tpu_custom_call.1} parent=1 // pred_check
      _
    $region63: #{tpu_custom_call.1} parent=1 // pred_check_branch
      %299 = sbr.rel (0) target = $region65
    $region64: #{tpu_custom_call.1} parent=1 // pred_region
      %s301 = ssub.s32 64, 64
      %302 = vsyncadd [#allocation7], %s301
      %s304 = sshll.u32 [#allocation6], 4
      %s305 = int_to_ptr.vmem [resolvable:$true] %s304
      %307 = dma.vmem_to_hbm [thread:$0]  %s305, 64, %s6, [#allocation7]
    $region65: #{tpu_custom_call.1} parent=1 // pred_fallthru
      _
    // Predicated region
    $region66: #{tpu_custom_call.1} parent=1 // pred_check
      _
    $region67: #{tpu_custom_call.1} parent=1 // pred_check_branch
      %309 = sbr.rel (0) target = $region69
    $region68: #{tpu_custom_call.1} parent=1 // pred_region
      %310 = dma.done [#allocation7], 64
    $region69: #{tpu_custom_call.1} parent=1 // pred_fallthru
      _
    %311 = vsyncpa [#allocation7], 1
  %312 = vsyncmov [#allocation3]
  %s313 = vpop.sfrf %312
  %p314 = scmp.eq.s32.totalorder %s313, 0
  %p315 = pneg %p314
  %317 = shalt.err (%p315)
  %s318 = scalar_lea.sflag [#allocation3], 1
  %319 = vsyncmov %s318
  %s320 = vpop.sfrf %319
  %p321 = scmp.eq.s32.totalorder %s320, 0
  %p322 = pneg %p321
  %324 = shalt.err (%p322)
  %s325 = scalar_lea.sflag [#allocation3], 2
  %326 = vsyncmov %s325
  %s327 = vpop.sfrf %326
  %p328 = scmp.eq.s32.totalorder %s327, 0
  %p329 = pneg %p328
  %331 = shalt.err (%p329)
  %s332 = scalar_lea.sflag [#allocation3], 3
  %333 = vsyncmov %s332
  %s334 = vpop.sfrf %333
  %p335 = scmp.eq.s32.totalorder %s334, 0
  %p336 = pneg %p335
  %338 = shalt.err (%p336)
  %s339 = scalar_lea.sflag [#allocation3], 4
  %340 = vsyncmov %s339
  %s341 = vpop.sfrf %340
  %p342 = scmp.eq.s32.totalorder %s341, 0
  %p343 = pneg %p342
  %345 = shalt.err (%p343)
  %s346 = scalar_lea.sflag [#allocation3], 5
  %347 = vsyncmov %s346
  %s348 = vpop.sfrf %347
  %p349 = scmp.eq.s32.totalorder %s348, 0
  %p350 = pneg %p349
  %352 = shalt.err (%p350)
  %s353 = scalar_lea.sflag [#allocation3], 6
  %354 = vsyncmov %s353
  %s355 = vpop.sfrf %354
  %p356 = scmp.eq.s32.totalorder %s355, 0
  %p357 = pneg %p356
  %359 = shalt.err (%p357)
  %s360 = scalar_lea.sflag [#allocation3], 7
  %361 = vsyncmov %s360
  %s362 = vpop.sfrf %361
  %p363 = scmp.eq.s32.totalorder %s362, 0
  %p364 = pneg %p363
  %366 = shalt.err (%p364)

</llo_original>
